<compile_context>
chip_gen: v5e
topology: v5e:2x2
jax: 0.10.0
libtpu: 0.0.40
codegen_flags: <defaults>
</compile_context>

<pallas_src>
import jax
import jax.numpy as jnp
from jax.experimental import pallas as pl
from jax.experimental.pallas import tpu as pltpu


def _row_pool_matrix(h: int) -> jnp.ndarray:
    """(Ho, H) 0/1 matrix: out[i] = sum over rows {2i-1, 2i, 2i+1} ∩ [0, H)."""
    ho = (h - 1) // 2 + 1
    rows = jnp.arange(ho)[:, None]
    cols = jnp.arange(h)[None, :]
    mask = (cols >= 2 * rows - 1) & (cols <= 2 * rows + 1)
    return mask.astype(jnp.float32)


def _col_pool_matrix_packed(w: int, g: int) -> jnp.ndarray:
    """(g*W, g*Wo) block-diagonal column pooling matrix with 1/9 folded in."""
    wo = (w - 1) // 2 + 1
    r = jnp.arange(g * w)
    c = jnp.arange(g * wo)
    k = (r % w)[:, None]       # column within channel block (input)
    cr = (r // w)[:, None]     # channel block of the row
    j = (c % wo)[None, :]      # column within channel block (output)
    cc = (c // wo)[None, :]    # channel block of the column
    mask = (cr == cc) & (k >= 2 * j - 1) & (k <= 2 * j + 1)
    return mask.astype(jnp.float32) * (1.0 / 9.0)


def _make_kernel(num_levels: int, bc: int):
    """Kernel processing `bc` channel-groups through all pyramid levels."""

    def kernel(*refs):
        x_ref = refs[0]
        mat_refs = refs[1:1 + 2 * num_levels]
        o_ref = refs[1 + 2 * num_levels]

        # Hoist the small grid-invariant pooling matrices out of the slab loop.
        phs = [mat_refs[2 * l][...] for l in range(num_levels)]
        pws = [mat_refs[2 * l + 1][...] for l in range(num_levels)]

        for s in range(bc):  # static, bounded unroll (bc <= 8)
            y = x_ref[s].astype(jnp.float32)            # (H, g*W)
            for l in range(num_levels):
                # Row pooling then (block-diagonal) column pooling on the MXU.
                y = jnp.dot(phs[l], y, preferred_element_type=jnp.float32)
                y = jnp.dot(y, pws[l], preferred_element_type=jnp.float32)
            o_ref[s] = y.astype(o_ref.dtype)

    return kernel


def downsampling_avg(x_nchw: jnp.ndarray, sampling_times: int) -> jnp.ndarray:
    """Pyramid downsampling: AvgPool2d(3, stride=2, padding=1) x sampling_times.

    Args:
      x_nchw: (N, C, H, W) input, matching the PyTorch module's convention.
    Returns:
      (N, C, H', W') downsampled output.
    """
    n, c, h, w = x_nchw.shape
    if sampling_times <= 0:
        return x_nchw
    b = n * c

    # Per-level spatial sizes.
    hs, ws = [h], [w]
    for _ in range(sampling_times):
        hs.append((hs[-1] - 1) // 2 + 1)
        ws.append((ws[-1] - 1) // 2 + 1)
    hf, wf = hs[-1], ws[-1]

    # Lane packing factor: make the OUTPUT last dim >= 128 when possible while
    # keeping the packed input width (and hence the Pw matrices) bounded.
    g = min(max(1, 128 // wf), max(1, 1024 // w))

    # Pad channels to a multiple of g and pack g channels along the lane axis.
    b_pad = -(-b // g) * g
    x = x_nchw.reshape(b, h, w)
    if b_pad != b:
        x = jnp.concatenate([x, jnp.zeros((b_pad - b, h, w), x.dtype)], axis=0)
    groups = b_pad // g
    xp = (x.reshape(groups, g, h, w)
           .transpose(0, 2, 1, 3)
           .reshape(groups, h, g * w))

    # Pooling matrices: one (Ph, Pw) pair per pyramid level (1/9 inside Pw).
    mats = []
    for lvl in range(sampling_times):
        mats.append(_row_pool_matrix(hs[lvl]))
        mats.append(_col_pool_matrix_packed(ws[lvl], g))

    # Channel-groups per grid step: amortize per-step overhead with ~4 MiB of
    # input per step, bounded unroll of 8 slabs.
    group_bytes = h * g * w * x_nchw.dtype.itemsize
    bc = max(1, min(8, groups, (4 * 1024 * 1024) // max(1, group_bytes)))
    groups_pad = -(-groups // bc) * bc
    if groups_pad != groups:
        xp = jnp.concatenate(
            [xp, jnp.zeros((groups_pad - groups, h, g * w), xp.dtype)], axis=0)
    grid = (groups_pad // bc,)

    in_specs = [pl.BlockSpec((bc, h, g * w), lambda i: (i, 0, 0))]
    for m in mats:
        # Grid-invariant blocks (same block index every step => fetched once).
        in_specs.append(pl.BlockSpec(m.shape, lambda i: (0, 0)))
    out_specs = pl.BlockSpec((bc, hf, g * wf), lambda i: (i, 0, 0))

    out = pl.pallas_call(
        _make_kernel(sampling_times, bc),
        out_shape=jax.ShapeDtypeStruct((groups_pad, hf, g * wf), x_nchw.dtype),
        grid=grid,
        in_specs=in_specs,
        out_specs=out_specs,
        compiler_params=pltpu.CompilerParams(
            dimension_semantics=("parallel",),
            vmem_limit_bytes=48 * 1024 * 1024,
        ),
    )(xp, *mats)

    # Unpack lanes -> channels and strip padding.
    out = (out[:groups]
           .reshape(groups, hf, g, wf)
           .transpose(0, 2, 1, 3)
           .reshape(groups * g, hf, wf)[:b])
    return out.reshape(n, c, hf, wf)


def _reference_downsampling_avg(x_nchw: jnp.ndarray,
                                sampling_times: int) -> jnp.ndarray:
    """Pure-JAX reference (matches torch AvgPool2d(3,2,1) defaults)."""
    y = x_nchw
    for _ in range(sampling_times):
        s = jax.lax.reduce_window(
            y, 0.0, jax.lax.add,
            window_dimensions=(1, 1, 3, 3),
            window_strides=(1, 1, 2, 2),
            padding=((0, 0), (0, 0), (1, 1), (1, 1)),
        )
        y = s / 9.0
    return y


if __name__ == "__main__":
    key = jax.random.PRNGKey(0)
    # Small RGB-like input, NCHW as in the PyTorch module.
    N, C, H, W = 2, 3, 16, 16
    sampling_times = 2  # 16 -> 8 -> 4
    x = jax.random.normal(key, (N, C, H, W), dtype=jnp.float32)

    out = downsampling_avg(x, sampling_times)
    out = jax.block_until_ready(out)

    ref = _reference_downsampling_avg(x, sampling_times)
    assert out.shape == ref.shape, (out.shape, ref.shape)
    assert jnp.allclose(out, ref, atol=1e-5, rtol=1e-5), "mismatch vs reference"

    print("KERNEL_OK")
</pallas_src>

<mosaic_0001>
module attributes {stable_mosaic.version = 11 : i64} {
  func.func @kernel(%arg0: i32, %arg1: memref<1x16x512xf32, #tpu.memory_space<vmem>>, %arg2: memref<8x16xf32, #tpu.memory_space<vmem>>, %arg3: memref<512x256xf32, #tpu.memory_space<vmem>>, %arg4: memref<4x8xf32, #tpu.memory_space<vmem>>, %arg5: memref<256x128xf32, #tpu.memory_space<vmem>>, %arg6: memref<1x4x128xf32, #tpu.memory_space<vmem>>) attributes {dimension_semantics = [#tpu.dimension_semantics<parallel>], iteration_bounds = array<i64: 1>, scalar_prefetch = 0 : i64, scratch_operands = 0 : i64, tpu.core_type = #tpu.core_type<tc>, window_params = [{transform_indices = @transform_0, window_bounds = array<i64: 1, 16, 512>}, {pipeline_mode = #tpu.pipeline_mode<synchronous>, transform_indices = @transform_1, window_bounds = array<i64: 8, 16>}, {pipeline_mode = #tpu.pipeline_mode<synchronous>, transform_indices = @transform_2, window_bounds = array<i64: 512, 256>}, {pipeline_mode = #tpu.pipeline_mode<synchronous>, transform_indices = @transform_3, window_bounds = array<i64: 4, 8>}, {pipeline_mode = #tpu.pipeline_mode<synchronous>, transform_indices = @transform_4, window_bounds = array<i64: 256, 128>}, {transform_indices = @transform_5, window_bounds = array<i64: 1, 4, 128>}]} {
    %c0 = arith.constant 0 : index
    %c0_0 = arith.constant 0 : index
    %0 = vector.load %arg2[%c0, %c0_0] : memref<8x16xf32, #tpu.memory_space<vmem>>, vector<8x16xf32>
    %c0_1 = arith.constant 0 : index
    %c0_2 = arith.constant 0 : index
    %1 = vector.load %arg4[%c0_1, %c0_2] : memref<4x8xf32, #tpu.memory_space<vmem>>, vector<4x8xf32>
    %c0_3 = arith.constant 0 : index
    %c0_4 = arith.constant 0 : index
    %2 = vector.load %arg3[%c0_3, %c0_4] : memref<512x256xf32, #tpu.memory_space<vmem>>, vector<512x256xf32>
    %c0_5 = arith.constant 0 : index
    %c0_6 = arith.constant 0 : index
    %3 = vector.load %arg5[%c0_5, %c0_6] : memref<256x128xf32, #tpu.memory_space<vmem>>, vector<256x128xf32>
    %c0_7 = arith.constant 0 : index
    %c0_8 = arith.constant 0 : index
    %c0_9 = arith.constant 0 : index
    %4 = vector.load %arg1[%c0_7, %c0_8, %c0_9] : memref<1x16x512xf32, #tpu.memory_space<vmem>>, vector<1x16x512xf32>
    %5 = vector.shape_cast %4 : vector<1x16x512xf32> to vector<16x512xf32>
    %cst = arith.constant dense<0.000000e+00> : vector<8x512xf32>
    %6 = tpu.matmul %0, %5, %cst {dimension_numbers = #tpu.dot_dimension_numbers<[1], [0], [0], [1], [0, 0, 1, 1], [], []>} : vector<8x16xf32>, vector<16x512xf32>, vector<8x512xf32> -> vector<8x512xf32>
    %cst_10 = arith.constant dense<0.000000e+00> : vector<8x256xf32>
    %7 = tpu.matmul %6, %2, %cst_10 {dimension_numbers = #tpu.dot_dimension_numbers<[1], [0], [0], [1], [0, 0, 1, 1], [], []>} : vector<8x512xf32>, vector<512x256xf32>, vector<8x256xf32> -> vector<8x256xf32>
    %cst_11 = arith.constant dense<0.000000e+00> : vector<4x256xf32>
    %8 = tpu.matmul %1, %7, %cst_11 {dimension_numbers = #tpu.dot_dimension_numbers<[1], [0], [0], [1], [0, 0, 1, 1], [], []>} : vector<4x8xf32>, vector<8x256xf32>, vector<4x256xf32> -> vector<4x256xf32>
    %cst_12 = arith.constant dense<0.000000e+00> : vector<4x128xf32>
    %9 = tpu.matmul %8, %3, %cst_12 {dimension_numbers = #tpu.dot_dimension_numbers<[1], [0], [0], [1], [0, 0, 1, 1], [], []>} : vector<4x256xf32>, vector<256x128xf32>, vector<4x128xf32> -> vector<4x128xf32>
    %c0_13 = arith.constant 0 : index
    %c0_14 = arith.constant 0 : index
    %c0_15 = arith.constant 0 : index
    %10 = vector.load %arg6[%c0_13, %c0_14, %c0_15] : memref<1x4x128xf32, #tpu.memory_space<vmem>>, vector<1x4x128xf32>
    %11 = vector.shape_cast %10 : vector<1x4x128xf32> to vector<4x128xf32>
    %12 = vector.shape_cast %9 : vector<4x128xf32> to vector<1x4x128xf32>
    tpu.vector_store %arg6[%c0_13, %c0_14, %c0_15], %12 {strides = array<i32>} : memref<1x4x128xf32, #tpu.memory_space<vmem>>, vector<1x4x128xf32>,
    return
  }
  func.func @transform_0(%arg0: i32) -> (i32, i32, i32) {
    %c0_i32 = arith.constant 0 : i32
    %c0_i32_0 = arith.constant 0 : i32
    %c0_i32_1 = arith.constant 0 : i32
    return %arg0, %c0_i32, %c0_i32_0 : i32, i32, i32
  }
  func.func @transform_1(%arg0: i32) -> (i32, i32) {
    %c0_i32 = arith.constant 0 : i32
    %c0_i32_0 = arith.constant 0 : i32
    %c0_i32_1 = arith.constant 0 : i32
    return %c0_i32, %c0_i32_0 : i32, i32
  }
  func.func @transform_2(%arg0: i32) -> (i32, i32) {
    %c0_i32 = arith.constant 0 : i32
    %c0_i32_0 = arith.constant 0 : i32
    %c0_i32_1 = arith.constant 0 : i32
    return %c0_i32, %c0_i32_0 : i32, i32
  }
  func.func @transform_3(%arg0: i32) -> (i32, i32) {
    %c0_i32 = arith.constant 0 : i32
    %c0_i32_0 = arith.constant 0 : i32
    %c0_i32_1 = arith.constant 0 : i32
    return %c0_i32, %c0_i32_0 : i32, i32
  }
  func.func @transform_4(%arg0: i32) -> (i32, i32) {
    %c0_i32 = arith.constant 0 : i32
    %c0_i32_0 = arith.constant 0 : i32
    %c0_i32_1 = arith.constant 0 : i32
    return %c0_i32, %c0_i32_0 : i32, i32
  }
  func.func @transform_5(%arg0: i32) -> (i32, i32, i32) {
    %c0_i32 = arith.constant 0 : i32
    %c0_i32_0 = arith.constant 0 : i32
    %c0_i32_1 = arith.constant 0 : i32
    return %arg0, %c0_i32, %c0_i32_0 : i32, i32, i32
  }
}

</mosaic_0001>

<llo_original>
// kernel: tpu_custom_call.1
$region0: #{tpu_custom_call.1}
  #allocation0 [shape = 'u32[]', space=smem, size = 0x4, offset = 0x4, fixed_abs, tag = 'smem constant byte address 0x4 - core index']
  #allocation1 [shape = 'u32[72,128]{1,0:T(1,128)}', space=vmem, size = 0x9000, scoped, tag = 'internal scratch']
  %s0 = inlined_call_operand.hbm [shape: f32[1,16,512], index: 0, kind: input, shape index: {}]
  %s1 = inlined_call_operand.hbm [shape: f32[8,16], index: 1, kind: input, shape index: {}]
  %s2 = inlined_call_operand.hbm [shape: f32[512,256], index: 2, kind: input, shape index: {}]
  %s3 = inlined_call_operand.hbm [shape: f32[4,8], index: 3, kind: input, shape index: {}]
  %s4 = inlined_call_operand.hbm [shape: f32[256,128], index: 4, kind: input, shape index: {}]
  %s5 = inlined_call_operand.hbm [shape: f32[1,4,128], index: 5, kind: output, shape index: {}]
  %s6 = sld [smem:[#allocation0]]
  $region50: #{tpu_custom_call.1} parent=0
    _
  %s8 = ssub.s32 1, %s6
  %s9 = scalar_select 0, %s8, %s6
  $region1: #{tpu_custom_call.1} parent=0
    #allocation2 [shape = 'u8[32768]{0}', space=vmem, size = 0x8000, scoped, tag = 'input window, operand 0, single buffered']
    #allocation3 [shape = 's32[1]{0}', space=sflag, size = 0x4, scoped, tag = 'scoped memory for tpu_custom_call.1']
    #allocation4 [shape = 's32[1]{0}', space=sflag, size = 0x4, scoped, tag = 'scoped memory for tpu_custom_call.1']
    #allocation5 [shape = 'u8[4096]{0}', space=vmem, size = 0x1000, scoped, tag = 'input window, operand 1, single buffered']
    #allocation6 [shape = 's32[1]{0}', space=sflag, size = 0x4, scoped, tag = 'scoped memory for tpu_custom_call.1']
    #allocation7 [shape = 'u8[524288]{0}', space=vmem, size = 0x80000, scoped, tag = 'input window, operand 2, single buffered']
    #allocation8 [shape = 'u8[2048]{0}', space=vmem, size = 0x800, scoped, tag = 'input window, operand 3, single buffered']
    #allocation9 [shape = 's32[1]{0}', space=sflag, size = 0x4, scoped, tag = 'scoped memory for tpu_custom_call.1']
    #allocation10 [shape = 'u8[131072]{0}', space=vmem, size = 0x20000, scoped, tag = 'input window, operand 4, single buffered']
    #allocation11 [shape = 'u8[2048]{0}', space=vmem, size = 0x800, scoped, tag = 'output window, operand 0, single buffered']
    %10 = vsyncpa [#allocation3], 0
    %11 = vsyncpa [#allocation6], 0
    %12 = vsyncpa [#allocation9], 0
    %13 = vsyncpa [#allocation4], 0
    // Predicated region
    $region2: #{tpu_custom_call.1} parent=1 // pred_check
      _
    $region3: #{tpu_custom_call.1} parent=1 // pred_check_branch
      %15 = sbr.rel (0) target = $region5
    $region4: #{tpu_custom_call.1} parent=1 // pred_region
      %17 = vsyncadd [#allocation3], 0
      %s18 = sshll.u32 %s0, 4
      %s19 = int_to_ptr.hbm [resolvable:$true] %s18
      %s20 = sshll.u32 [#allocation2], 4
      %s21 = int_to_ptr.vmem [resolvable:$true] %s20
      %26 = dma.hbm_to_vmem [thread:$0]  %s19, 1024, %s21, [#allocation3], 512, 512, 32
    $region5: #{tpu_custom_call.1} parent=1 // pred_fallthru
      _
    // Predicated region
    $region6: #{tpu_custom_call.1} parent=1 // pred_check
      _
    $region7: #{tpu_custom_call.1} parent=1 // pred_check_branch
      %28 = sbr.rel (0) target = $region9
    $region8: #{tpu_custom_call.1} parent=1 // pred_region
      %30 = vsyncadd [#allocation6], 0
      %s32 = sshll.u32 %s1, 4
      %s33 = int_to_ptr.hbm [resolvable:$true] %s32
      %s34 = sshll.u32 [#allocation5], 4
      %s35 = int_to_ptr.vmem [resolvable:$true] %s34
      %37 = dma.hbm_to_vmem [thread:$0]  %s33, 128, %s35, [#allocation6]
    $region9: #{tpu_custom_call.1} parent=1 // pred_fallthru
      _
    // Predicated region
    $region10: #{tpu_custom_call.1} parent=1 // pred_check
      _
    $region11: #{tpu_custom_call.1} parent=1 // pred_check_branch
      %39 = sbr.rel (0) target = $region13
    $region12: #{tpu_custom_call.1} parent=1 // pred_region
      %41 = vsyncadd [#allocation6], 0
      %s42 = sshll.u32 %s2, 4
      %s43 = int_to_ptr.hbm [resolvable:$true] %s42
      %s44 = sshll.u32 [#allocation7], 4
      %s45 = int_to_ptr.vmem [resolvable:$true] %s44
      %50 = dma.hbm_to_vmem [thread:$0]  %s43, 16384, %s45, [#allocation6], 256, 256, 16
    $region13: #{tpu_custom_call.1} parent=1 // pred_fallthru
      _
    // Predicated region
    $region14: #{tpu_custom_call.1} parent=1 // pred_check
      _
    $region15: #{tpu_custom_call.1} parent=1 // pred_check_branch
      %52 = sbr.rel (0) target = $region17
    $region16: #{tpu_custom_call.1} parent=1 // pred_region
      %54 = vsyncadd [#allocation9], 0
      %s56 = sshll.u32 %s3, 4
      %s57 = int_to_ptr.hbm [resolvable:$true] %s56
      %s58 = sshll.u32 [#allocation8], 4
      %s59 = int_to_ptr.vmem [resolvable:$true] %s58
      %61 = dma.hbm_to_vmem [thread:$0]  %s57, 64, %s59, [#allocation9]
    $region17: #{tpu_custom_call.1} parent=1 // pred_fallthru
      _
    // Predicated region
    $region18: #{tpu_custom_call.1} parent=1 // pred_check
      _
    $region19: #{tpu_custom_call.1} parent=1 // pred_check_branch
      %63 = sbr.rel (0) target = $region21
    $region20: #{tpu_custom_call.1} parent=1 // pred_region
      %65 = vsyncadd [#allocation9], 0
      %s66 = sshll.u32 %s4, 4
      %s67 = int_to_ptr.hbm [resolvable:$true] %s66
      %s68 = sshll.u32 [#allocation10], 4
      %s69 = int_to_ptr.vmem [resolvable:$true] %s68
      %74 = dma.hbm_to_vmem [thread:$0]  %s67, 4096, %s69, [#allocation9], 128, 128, 8
    $region21: #{tpu_custom_call.1} parent=1 // pred_fallthru
      _
    // Predicated region
    $region22: #{tpu_custom_call.1} parent=1 // pred_check
      _
    $region23: #{tpu_custom_call.1} parent=1 // pred_check_branch
      %76 = sbr.rel (0) target = $region25
    $region24: #{tpu_custom_call.1} parent=1 // pred_region
      %78 = dma.done [#allocation3], 1024
    $region25: #{tpu_custom_call.1} parent=1 // pred_fallthru
      _
    // Predicated region
    $region26: #{tpu_custom_call.1} parent=1 // pred_check
      _
    $region27: #{tpu_custom_call.1} parent=1 // pred_check_branch
      %80 = sbr.rel (0) target = $region29
    $region28: #{tpu_custom_call.1} parent=1 // pred_region
      %82 = dma.done [#allocation6], 128
    $region29: #{tpu_custom_call.1} parent=1 // pred_fallthru
      _
    // Predicated region
    $region30: #{tpu_custom_call.1} parent=1 // pred_check
      _
    $region31: #{tpu_custom_call.1} parent=1 // pred_check_branch
      %84 = sbr.rel (0) target = $region33
    $region32: #{tpu_custom_call.1} parent=1 // pred_region
      %86 = dma.done [#allocation6], 16384
    $region33: #{tpu_custom_call.1} parent=1 // pred_fallthru
      _
    // Predicated region
    $region34: #{tpu_custom_call.1} parent=1 // pred_check
      _
    $region35: #{tpu_custom_call.1} parent=1 // pred_check_branch
      %88 = sbr.rel (0) target = $region37
    $region36: #{tpu_custom_call.1} parent=1 // pred_region
      %90 = dma.done [#allocation9], 64
    $region37: #{tpu_custom_call.1} parent=1 // pred_fallthru
      _
    // Predicated region
    $region38: #{tpu_custom_call.1} parent=1 // pred_check
      _
    $region39: #{tpu_custom_call.1} parent=1 // pred_check_branch
      %92 = sbr.rel (0) target = $region41
    $region40: #{tpu_custom_call.1} parent=1 // pred_region
      %94 = dma.done [#allocation9], 4096
    $region41: #{tpu_custom_call.1} parent=1 // pred_fallthru
      _
    %v95 = vld [vmem:[#allocation5] sm:$0xff]
    %v96 = vld [vmem:[#allocation8] sm:$0xf]
    %v97 = vld [vmem:[#allocation7] sm:$0xff]
    %v98 = vld [vmem:[#allocation7 + $0x8] sm:$0xff]
    %v99 = vld [vmem:[#allocation7 + $0x10] sm:$0xff]
    %v100 = vld [vmem:[#allocation7 + $0x18] sm:$0xff]
    %v101 = vld [vmem:[#allocation7 + $0x20] sm:$0xff]
    %v102 = vld [vmem:[#allocation7 + $0x28] sm:$0xff]
    %v103 = vld [vmem:[#allocation7 + $0x30] sm:$0xff]
    %v104 = vld [vmem:[#allocation7 + $0x38] sm:$0xff]
    %v105 = vld [vmem:[#allocation7 + $0x40] sm:$0xff]
    %v106 = vld [vmem:[#allocation7 + $0x48] sm:$0xff]
    %v107 = vld [vmem:[#allocation7 + $0x50] sm:$0xff]
    %v108 = vld [vmem:[#allocation7 + $0x58] sm:$0xff]
    %v109 = vld [vmem:[#allocation7 + $0x60] sm:$0xff]
    %v110 = vld [vmem:[#allocation7 + $0x68] sm:$0xff]
    %v111 = vld [vmem:[#allocation7 + $0x70] sm:$0xff]
    %v112 = vld [vmem:[#allocation7 + $0x78] sm:$0xff]
    %v113 = vld [vmem:[#allocation7 + $0x80] sm:$0xff]
    %v114 = vld [vmem:[#allocation7 + $0x88] sm:$0xff]
    %v115 = vld [vmem:[#allocation7 + $0x90] sm:$0xff]
    %v116 = vld [vmem:[#allocation7 + $0x98] sm:$0xff]
    %v117 = vld [vmem:[#allocation7 + $0xa0] sm:$0xff]
    %v118 = vld [vmem:[#allocation7 + $0xa8] sm:$0xff]
    %v119 = vld [vmem:[#allocation7 + $0xb0] sm:$0xff]
    %v120 = vld [vmem:[#allocation7 + $0xb8] sm:$0xff]
    %v121 = vld [vmem:[#allocation7 + $0xc0] sm:$0xff]
    %v122 = vld [vmem:[#allocation7 + $0xc8] sm:$0xff]
    %v123 = vld [vmem:[#allocation7 + $0xd0] sm:$0xff]
    %v124 = vld [vmem:[#allocation7 + $0xd8] sm:$0xff]
    %v125 = vld [vmem:[#allocation7 + $0xe0] sm:$0xff]
    %v126 = vld [vmem:[#allocation7 + $0xe8] sm:$0xff]
    %v127 = vld [vmem:[#allocation7 + $0xf0] sm:$0xff]
    %v128 = vld [vmem:[#allocation7 + $0xf8] sm:$0xff]
    %v129 = vld [vmem:[#allocation7 + $0x100] sm:$0xff]
    %v130 = vld [vmem:[#allocation7 + $0x108] sm:$0xff]
    %v131 = vld [vmem:[#allocation7 + $0x110] sm:$0xff]
    %v132 = vld [vmem:[#allocation7 + $0x118] sm:$0xff]
    %v133 = vld [vmem:[#allocation7 + $0x120] sm:$0xff]
    %v134 = vld [vmem:[#allocation7 + $0x128] sm:$0xff]
    %v135 = vld [vmem:[#allocation7 + $0x130] sm:$0xff]
    %v136 = vld [vmem:[#allocation7 + $0x138] sm:$0xff]
    %v137 = vld [vmem:[#allocation7 + $0x140] sm:$0xff]
    %v138 = vld [vmem:[#allocation7 + $0x148] sm:$0xff]
    %v139 = vld [vmem:[#allocation7 + $0x150] sm:$0xff]
    %v140 = vld [vmem:[#allocation7 + $0x158] sm:$0xff]
    %v141 = vld [vmem:[#allocation7 + $0x160] sm:$0xff]
    %v142 = vld [vmem:[#allocation7 + $0x168] sm:$0xff]
    %v143 = vld [vmem:[#allocation7 + $0x170] sm:$0xff]
    %v144 = vld [vmem:[#allocation7 + $0x178] sm:$0xff]
    %v145 = vld [vmem:[#allocation7 + $0x180] sm:$0xff]
    %v146 = vld [vmem:[#allocation7 + $0x188] sm:$0xff]
    %v147 = vld [vmem:[#allocation7 + $0x190] sm:$0xff]
    %v148 = vld [vmem:[#allocation7 + $0x198] sm:$0xff]
    %v149 = vld [vmem:[#allocation7 + $0x1a0] sm:$0xff]
    %v150 = vld [vmem:[#allocation7 + $0x1a8] sm:$0xff]
    %v151 = vld [vmem:[#allocation7 + $0x1b0] sm:$0xff]
    %v152 = vld [vmem:[#allocation7 + $0x1b8] sm:$0xff]
    %v153 = vld [vmem:[#allocation7 + $0x1c0] sm:$0xff]
    %v154 = vld [vmem:[#allocation7 + $0x1c8] sm:$0xff]
    %v155 = vld [vmem:[#allocation7 + $0x1d0] sm:$0xff]
    %v156 = vld [vmem:[#allocation7 + $0x1d8] sm:$0xff]
    %v157 = vld [vmem:[#allocation7 + $0x1e0] sm:$0xff]
    %v158 = vld [vmem:[#allocation7 + $0x1e8] sm:$0xff]
    %v159 = vld [vmem:[#allocation7 + $0x1f0] sm:$0xff]
    %v160 = vld [vmem:[#allocation7 + $0x1f8] sm:$0xff]
    %v161 = vld [vmem:[#allocation7 + $0x200] sm:$0xff]
    %v162 = vld [vmem:[#allocation7 + $0x208] sm:$0xff]
    %v163 = vld [vmem:[#allocation7 + $0x210] sm:$0xff]
    %v164 = vld [vmem:[#allocation7 + $0x218] sm:$0xff]
    %v165 = vld [vmem:[#allocation7 + $0x220] sm:$0xff]
    %v166 = vld [vmem:[#allocation7 + $0x228] sm:$0xff]
    %v167 = vld [vmem:[#allocation7 + $0x230] sm:$0xff]
    %v168 = vld [vmem:[#allocation7 + $0x238] sm:$0xff]
    %v169 = vld [vmem:[#allocation7 + $0x240] sm:$0xff]
    %v170 = vld [vmem:[#allocation7 + $0x248] sm:$0xff]
    %v171 = vld [vmem:[#allocation7 + $0x250] sm:$0xff]
    %v172 = vld [vmem:[#allocation7 + $0x258] sm:$0xff]
    %v173 = vld [vmem:[#allocation7 + $0x260] sm:$0xff]
    %v174 = vld [vmem:[#allocation7 + $0x268] sm:$0xff]
    %v175 = vld [vmem:[#allocation7 + $0x270] sm:$0xff]
    %v176 = vld [vmem:[#allocation7 + $0x278] sm:$0xff]
    %v177 = vld [vmem:[#allocation7 + $0x280] sm:$0xff]
    %v178 = vld [vmem:[#allocation7 + $0x288] sm:$0xff]
    %v179 = vld [vmem:[#allocation7 + $0x290] sm:$0xff]
    %v180 = vld [vmem:[#allocation7 + $0x298] sm:$0xff]
    %v181 = vld [vmem:[#allocation7 + $0x2a0] sm:$0xff]
    %v182 = vld [vmem:[#allocation7 + $0x2a8] sm:$0xff]
    %v183 = vld [vmem:[#allocation7 + $0x2b0] sm:$0xff]
    %v184 = vld [vmem:[#allocation7 + $0x2b8] sm:$0xff]
    %v185 = vld [vmem:[#allocation7 + $0x2c0] sm:$0xff]
    %v186 = vld [vmem:[#allocation7 + $0x2c8] sm:$0xff]
    %v187 = vld [vmem:[#allocation7 + $0x2d0] sm:$0xff]
    %v188 = vld [vmem:[#allocation7 + $0x2d8] sm:$0xff]
    %v189 = vld [vmem:[#allocation7 + $0x2e0] sm:$0xff]
    %v190 = vld [vmem:[#allocation7 + $0x2e8] sm:$0xff]
    %v191 = vld [vmem:[#allocation7 + $0x2f0] sm:$0xff]
    %v192 = vld [vmem:[#allocation7 + $0x2f8] sm:$0xff]
    %v193 = vld [vmem:[#allocation7 + $0x300] sm:$0xff]
    %v194 = vld [vmem:[#allocation7 + $0x308] sm:$0xff]
    %v195 = vld [vmem:[#allocation7 + $0x310] sm:$0xff]
    %v196 = vld [vmem:[#allocation7 + $0x318] sm:$0xff]
    %v197 = vld [vmem:[#allocation7 + $0x320] sm:$0xff]
    %v198 = vld [vmem:[#allocation7 + $0x328] sm:$0xff]
    %v199 = vld [vmem:[#allocation7 + $0x330] sm:$0xff]
    %v200 = vld [vmem:[#allocation7 + $0x338] sm:$0xff]
    %v201 = vld [vmem:[#allocation7 + $0x340] sm:$0xff]
    %v202 = vld [vmem:[#allocation7 + $0x348] sm:$0xff]
    %v203 = vld [vmem:[#allocation7 + $0x350] sm:$0xff]
    %v204 = vld [vmem:[#allocation7 + $0x358] sm:$0xff]
    %v205 = vld [vmem:[#allocation7 + $0x360] sm:$0xff]
    %v206 = vld [vmem:[#allocation7 + $0x368] sm:$0xff]
    %v207 = vld [vmem:[#allocation7 + $0x370] sm:$0xff]
    %v208 = vld [vmem:[#allocation7 + $0x378] sm:$0xff]
    %v209 = vld [vmem:[#allocation7 + $0x380] sm:$0xff]
    %v210 = vld [vmem:[#allocation7 + $0x388] sm:$0xff]
    %v211 = vld [vmem:[#allocation7 + $0x390] sm:$0xff]
    %v212 = vld [vmem:[#allocation7 + $0x398] sm:$0xff]
    %v213 = vld [vmem:[#allocation7 + $0x3a0] sm:$0xff]
    %v214 = vld [vmem:[#allocation7 + $0x3a8] sm:$0xff]
    %v215 = vld [vmem:[#allocation7 + $0x3b0] sm:$0xff]
    %v216 = vld [vmem:[#allocation7 + $0x3b8] sm:$0xff]
    %v217 = vld [vmem:[#allocation7 + $0x3c0] sm:$0xff]
    %v218 = vld [vmem:[#allocation7 + $0x3c8] sm:$0xff]
    %v219 = vld [vmem:[#allocation7 + $0x3d0] sm:$0xff]
    %v220 = vld [vmem:[#allocation7 + $0x3d8] sm:$0xff]
    %v221 = vld [vmem:[#allocation7 + $0x3e0] sm:$0xff]
    %v222 = vld [vmem:[#allocation7 + $0x3e8] sm:$0xff]
    %v223 = vld [vmem:[#allocation7 + $0x3f0] sm:$0xff]
    %v224 = vld [vmem:[#allocation7 + $0x3f8] sm:$0xff]
    %v225 = vld [vmem:[#allocation10] sm:$0xff]
    %v226 = vld [vmem:[#allocation10 + $0x8] sm:$0xff]
    %v227 = vld [vmem:[#allocation10 + $0x10] sm:$0xff]
    %v228 = vld [vmem:[#allocation10 + $0x18] sm:$0xff]
    %v229 = vld [vmem:[#allocation10 + $0x20] sm:$0xff]
    %v230 = vld [vmem:[#allocation10 + $0x28] sm:$0xff]
    %v231 = vld [vmem:[#allocation10 + $0x30] sm:$0xff]
    %v232 = vld [vmem:[#allocation10 + $0x38] sm:$0xff]
    %v233 = vld [vmem:[#allocation10 + $0x40] sm:$0xff]
    %v234 = vld [vmem:[#allocation10 + $0x48] sm:$0xff]
    %v235 = vld [vmem:[#allocation10 + $0x50] sm:$0xff]
    %v236 = vld [vmem:[#allocation10 + $0x58] sm:$0xff]
    %v237 = vld [vmem:[#allocation10 + $0x60] sm:$0xff]
    %v238 = vld [vmem:[#allocation10 + $0x68] sm:$0xff]
    %v239 = vld [vmem:[#allocation10 + $0x70] sm:$0xff]
    %v240 = vld [vmem:[#allocation10 + $0x78] sm:$0xff]
    %v241 = vld [vmem:[#allocation10 + $0x80] sm:$0xff]
    %v242 = vld [vmem:[#allocation10 + $0x88] sm:$0xff]
    %v243 = vld [vmem:[#allocation10 + $0x90] sm:$0xff]
    %v244 = vld [vmem:[#allocation10 + $0x98] sm:$0xff]
    %v245 = vld [vmem:[#allocation10 + $0xa0] sm:$0xff]
    %v246 = vld [vmem:[#allocation10 + $0xa8] sm:$0xff]
    %v247 = vld [vmem:[#allocation10 + $0xb0] sm:$0xff]
    %v248 = vld [vmem:[#allocation10 + $0xb8] sm:$0xff]
    %v249 = vld [vmem:[#allocation10 + $0xc0] sm:$0xff]
    %v250 = vld [vmem:[#allocation10 + $0xc8] sm:$0xff]
    %v251 = vld [vmem:[#allocation10 + $0xd0] sm:$0xff]
    %v252 = vld [vmem:[#allocation10 + $0xd8] sm:$0xff]
    %v253 = vld [vmem:[#allocation10 + $0xe0] sm:$0xff]
    %v254 = vld [vmem:[#allocation10 + $0xe8] sm:$0xff]
    %v255 = vld [vmem:[#allocation10 + $0xf0] sm:$0xff]
    %v256 = vld [vmem:[#allocation10 + $0xf8] sm:$0xff]
    %v257 = vld [vmem:[#allocation2] sm:$0xff]
    %v258 = vld [vmem:[#allocation2 + $0x8] sm:$0xff]
    %v259 = vld [vmem:[#allocation2 + $0x10] sm:$0xff]
    %v260 = vld [vmem:[#allocation2 + $0x18] sm:$0xff]
    %v261 = vld [vmem:[#allocation2 + $0x20] sm:$0xff]
    %v262 = vld [vmem:[#allocation2 + $0x28] sm:$0xff]
    %v263 = vld [vmem:[#allocation2 + $0x30] sm:$0xff]
    %v264 = vld [vmem:[#allocation2 + $0x38] sm:$0xff]
    %vm265 = vcmask 130048
    %v267 = vsel %vm265, %v95, 0
    %269 = vmatpush.msra.mxu0 0.0
    %270 = vmatpush.msra.mxu0 0.0
    %271 = vmatpush.msra.mxu0 0.0
    %272 = vmatpush.msra.mxu0 0.0
    %273 = vmatpush.msra.mxu0 0.0
    %274 = vmatpush.msra.mxu0 0.0
    %275 = vmatpush.msra.mxu0 0.0
    %276 = vmatpush.msra.mxu0 0.0
    %277 = vmatpush.msra.mxu0 0.0
    %278 = vmatpush.msra.mxu0 0.0
    %279 = vmatpush.msra.mxu0 0.0
    %280 = vmatpush.msra.mxu0 0.0
    %281 = vmatpush.msra.mxu0 0.0
    %282 = vmatpush.msra.mxu0 0.0
    %283 = vmatpush.msra.mxu0 %v261
    %284 = vmatpush.msra.mxu0 %v257
    %285 = vmatmul.f32.gmra.mxu0 %v267
    %v286 = vpop.f32.mrf.mxu0
    %v287 = vadd.f32 0.0, %v286
    %288 = vdwg.mxu0
    %289 = vmatpush.msra.mxu0 0.0
    %290 = vmatpush.msra.mxu0 0.0
    %291 = vmatpush.msra.mxu0 0.0
    %292 = vmatpush.msra.mxu0 0.0
    %293 = vmatpush.msra.mxu0 0.0
    %294 = vmatpush.msra.mxu0 0.0
    %295 = vmatpush.msra.mxu0 0.0
    %296 = vmatpush.msra.mxu0 0.0
    %297 = vmatpush.msra.mxu0 0.0
    %298 = vmatpush.msra.mxu0 0.0
    %299 = vmatpush.msra.mxu0 0.0
    %300 = vmatpush.msra.mxu0 0.0
    %301 = vmatpush.msra.mxu0 0.0
    %302 = vmatpush.msra.mxu0 0.0
    %303 = vmatpush.msra.mxu0 %v262
    %304 = vmatpush.msra.mxu0 %v258
    %305 = vmatmul.f32.gmra.mxu0 %v267
    %v306 = vpop.f32.mrf.mxu0
    %v307 = vadd.f32 0.0, %v306
    %308 = vdwg.mxu0
    %309 = vmatpush.msra.mxu0 0.0
    %310 = vmatpush.msra.mxu0 0.0
    %311 = vmatpush.msra.mxu0 0.0
    %312 = vmatpush.msra.mxu0 0.0
    %313 = vmatpush.msra.mxu0 0.0
    %314 = vmatpush.msra.mxu0 0.0
    %315 = vmatpush.msra.mxu0 0.0
    %316 = vmatpush.msra.mxu0 0.0
    %317 = vmatpush.msra.mxu0 0.0
    %318 = vmatpush.msra.mxu0 0.0
    %319 = vmatpush.msra.mxu0 0.0
    %320 = vmatpush.msra.mxu0 0.0
    %321 = vmatpush.msra.mxu0 0.0
    %322 = vmatpush.msra.mxu0 0.0
    %323 = vmatpush.msra.mxu0 %v263
    %324 = vmatpush.msra.mxu0 %v259
    %325 = vmatmul.f32.gmra.mxu0 %v267
    %v326 = vpop.f32.mrf.mxu0
    %v327 = vadd.f32 0.0, %v326
    %328 = vdwg.mxu0
    %329 = vmatpush.msra.mxu0 0.0
    %330 = vmatpush.msra.mxu0 0.0
    %331 = vmatpush.msra.mxu0 0.0
    %332 = vmatpush.msra.mxu0 0.0
    %333 = vmatpush.msra.mxu0 0.0
    %334 = vmatpush.msra.mxu0 0.0
    %335 = vmatpush.msra.mxu0 0.0
    %336 = vmatpush.msra.mxu0 0.0
    %337 = vmatpush.msra.mxu0 0.0
    %338 = vmatpush.msra.mxu0 0.0
    %339 = vmatpush.msra.mxu0 0.0
    %340 = vmatpush.msra.mxu0 0.0
    %341 = vmatpush.msra.mxu0 0.0
    %342 = vmatpush.msra.mxu0 0.0
    %343 = vmatpush.msra.mxu0 %v264
    %344 = vmatpush.msra.mxu0 %v260
    %345 = vmatmul.f32.gmra.mxu0 %v267
    %v346 = vpop.f32.mrf.mxu0
    %v347 = vadd.f32 0.0, %v346
    %348 = vdwg.mxu0
    %349 = vmatpush.msra.mxu0 %v127
    %350 = vmatpush.msra.mxu0 %v125
    %351 = vmatpush.msra.mxu0 %v123
    %352 = vmatpush.msra.mxu0 %v121
    %353 = vmatpush.msra.mxu0 %v119
    %354 = vmatpush.msra.mxu0 %v117
    %355 = vmatpush.msra.mxu0 %v115
    %356 = vmatpush.msra.mxu0 %v113
    %357 = vmatpush.msra.mxu0 %v111
    %358 = vmatpush.msra.mxu0 %v109
    %359 = vmatpush.msra.mxu0 %v107
    %360 = vmatpush.msra.mxu0 %v105
    %361 = vmatpush.msra.mxu0 %v103
    %362 = vmatpush.msra.mxu0 %v101
    %363 = vmatpush.msra.mxu0 %v99
    %364 = vmatpush.msra.mxu0 %v97
    %365 = vmatmul.f32.gmra.mxu0 %v287
    %v366 = vpop.f32.mrf.mxu0
    %v367 = vadd.f32 0.0, %v366
    %368 = vdwg.mxu0
    %369 = vmatpush.msra.mxu0 %v159
    %370 = vmatpush.msra.mxu0 %v157
    %371 = vmatpush.msra.mxu0 %v155
    %372 = vmatpush.msra.mxu0 %v153
    %373 = vmatpush.msra.mxu0 %v151
    %374 = vmatpush.msra.mxu0 %v149
    %375 = vmatpush.msra.mxu0 %v147
    %376 = vmatpush.msra.mxu0 %v145
    %377 = vmatpush.msra.mxu0 %v143
    %378 = vmatpush.msra.mxu0 %v141
    %379 = vmatpush.msra.mxu0 %v139
    %380 = vmatpush.msra.mxu0 %v137
    %381 = vmatpush.msra.mxu0 %v135
    %382 = vmatpush.msra.mxu0 %v133
    %383 = vmatpush.msra.mxu0 %v131
    %384 = vmatpush.msra.mxu0 %v129
    %385 = vmatmul.f32.gmra.mxu0 %v307
    %v386 = vpop.f32.mrf.mxu0
    %v387 = vadd.f32 %v367, %v386
    %388 = vdwg.mxu0
    %389 = vmatpush.msra.mxu0 %v191
    %390 = vmatpush.msra.mxu0 %v189
    %391 = vmatpush.msra.mxu0 %v187
    %392 = vmatpush.msra.mxu0 %v185
    %393 = vmatpush.msra.mxu0 %v183
    %394 = vmatpush.msra.mxu0 %v181
    %395 = vmatpush.msra.mxu0 %v179
    %396 = vmatpush.msra.mxu0 %v177
    %397 = vmatpush.msra.mxu0 %v175
    %398 = vmatpush.msra.mxu0 %v173
    %399 = vmatpush.msra.mxu0 %v171
    %400 = vmatpush.msra.mxu0 %v169
    %401 = vmatpush.msra.mxu0 %v167
    %402 = vmatpush.msra.mxu0 %v165
    %403 = vmatpush.msra.mxu0 %v163
    %404 = vmatpush.msra.mxu0 %v161
    %405 = vmatmul.f32.gmra.mxu0 %v327
    %v406 = vpop.f32.mrf.mxu0
    %v407 = vadd.f32 %v387, %v406
    %408 = vdwg.mxu0
    %409 = vmatpush.msra.mxu0 %v223
    %410 = vmatpush.msra.mxu0 %v221
    %411 = vmatpush.msra.mxu0 %v219
    %412 = vmatpush.msra.mxu0 %v217
    %413 = vmatpush.msra.mxu0 %v215
    %414 = vmatpush.msra.mxu0 %v213
    %415 = vmatpush.msra.mxu0 %v211
    %416 = vmatpush.msra.mxu0 %v209
    %417 = vmatpush.msra.mxu0 %v207
    %418 = vmatpush.msra.mxu0 %v205
    %419 = vmatpush.msra.mxu0 %v203
    %420 = vmatpush.msra.mxu0 %v201
    %421 = vmatpush.msra.mxu0 %v199
    %422 = vmatpush.msra.mxu0 %v197
    %423 = vmatpush.msra.mxu0 %v195
    %424 = vmatpush.msra.mxu0 %v193
    %425 = vmatmul.f32.gmra.mxu0 %v347
    %v426 = vpop.f32.mrf.mxu0
    %v427 = vadd.f32 %v407, %v426
    %428 = vdwg.mxu0
    %429 = vmatpush.msra.mxu0 %v128
    %430 = vmatpush.msra.mxu0 %v126
    %431 = vmatpush.msra.mxu0 %v124
    %432 = vmatpush.msra.mxu0 %v122
    %433 = vmatpush.msra.mxu0 %v120
    %434 = vmatpush.msra.mxu0 %v118
    %435 = vmatpush.msra.mxu0 %v116
    %436 = vmatpush.msra.mxu0 %v114
    %437 = vmatpush.msra.mxu0 %v112
    %438 = vmatpush.msra.mxu0 %v110
    %439 = vmatpush.msra.mxu0 %v108
    %440 = vmatpush.msra.mxu0 %v106
    %441 = vmatpush.msra.mxu0 %v104
    %442 = vmatpush.msra.mxu0 %v102
    %443 = vmatpush.msra.mxu0 %v100
    %444 = vmatpush.msra.mxu0 %v98
    %445 = vmatmul.f32.gmra.mxu0 %v287
    %v446 = vpop.f32.mrf.mxu0
    %v447 = vadd.f32 0.0, %v446
    %448 = vdwg.mxu0
    %449 = vmatpush.msra.mxu0 %v160
    %450 = vmatpush.msra.mxu0 %v158
    %451 = vmatpush.msra.mxu0 %v156
    %452 = vmatpush.msra.mxu0 %v154
    %453 = vmatpush.msra.mxu0 %v152
    %454 = vmatpush.msra.mxu0 %v150
    %455 = vmatpush.msra.mxu0 %v148
    %456 = vmatpush.msra.mxu0 %v146
    %457 = vmatpush.msra.mxu0 %v144
    %458 = vmatpush.msra.mxu0 %v142
    %459 = vmatpush.msra.mxu0 %v140
    %460 = vmatpush.msra.mxu0 %v138
    %461 = vmatpush.msra.mxu0 %v136
    %462 = vmatpush.msra.mxu0 %v134
    %463 = vmatpush.msra.mxu0 %v132
    %464 = vmatpush.msra.mxu0 %v130
    %465 = vmatmul.f32.gmra.mxu0 %v307
    %v466 = vpop.f32.mrf.mxu0
    %v467 = vadd.f32 %v447, %v466
    %468 = vdwg.mxu0
    %469 = vmatpush.msra.mxu0 %v192
    %470 = vmatpush.msra.mxu0 %v190
    %471 = vmatpush.msra.mxu0 %v188
    %472 = vmatpush.msra.mxu0 %v186
    %473 = vmatpush.msra.mxu0 %v184
    %474 = vmatpush.msra.mxu0 %v182
    %475 = vmatpush.msra.mxu0 %v180
    %476 = vmatpush.msra.mxu0 %v178
    %477 = vmatpush.msra.mxu0 %v176
    %478 = vmatpush.msra.mxu0 %v174
    %479 = vmatpush.msra.mxu0 %v172
    %480 = vmatpush.msra.mxu0 %v170
    %481 = vmatpush.msra.mxu0 %v168
    %482 = vmatpush.msra.mxu0 %v166
    %483 = vmatpush.msra.mxu0 %v164
    %484 = vmatpush.msra.mxu0 %v162
    %485 = vmatmul.f32.gmra.mxu0 %v327
    %v486 = vpop.f32.mrf.mxu0
    %v487 = vadd.f32 %v467, %v486
    %488 = vdwg.mxu0
    %489 = vmatpush.msra.mxu0 %v224
    %490 = vmatpush.msra.mxu0 %v222
    %491 = vmatpush.msra.mxu0 %v220
    %492 = vmatpush.msra.mxu0 %v218
    %493 = vmatpush.msra.mxu0 %v216
    %494 = vmatpush.msra.mxu0 %v214
    %495 = vmatpush.msra.mxu0 %v212
    %496 = vmatpush.msra.mxu0 %v210
    %497 = vmatpush.msra.mxu0 %v208
    %498 = vmatpush.msra.mxu0 %v206
    %499 = vmatpush.msra.mxu0 %v204
    %500 = vmatpush.msra.mxu0 %v202
    %501 = vmatpush.msra.mxu0 %v200
    %502 = vmatpush.msra.mxu0 %v198
    %503 = vmatpush.msra.mxu0 %v196
    %504 = vmatpush.msra.mxu0 %v194
    %505 = vmatmul.f32.gmra.mxu0 %v347
    %v506 = vpop.f32.mrf.mxu0
    %v507 = vadd.f32 %v487, %v506
    %508 = vdwg.mxu0
    %vm509 = vcmask 64512
    %v511 = vsel %vm509, %v96, 0
    %513 = vmatpush.msra.mxu0 0.0
    %514 = vmatpush.msra.mxu0 0.0
    %515 = vmatpush.msra.mxu0 0.0
    %516 = vmatpush.msra.mxu0 0.0
    %517 = vmatpush.msra.mxu0 0.0
    %518 = vmatpush.msra.mxu0 0.0
    %519 = vmatpush.msra.mxu0 0.0
    %520 = vmatpush.msra.mxu0 0.0
    %521 = vmatpush.msra.mxu0 0.0
    %522 = vmatpush.msra.mxu0 0.0
    %523 = vmatpush.msra.mxu0 0.0
    %524 = vmatpush.msra.mxu0 0.0
    %525 = vmatpush.msra.mxu0 0.0
    %526 = vmatpush.msra.mxu0 0.0
    %527 = vmatpush.msra.mxu0 0.0
    %528 = vmatpush.msra.mxu0 %v427
    %529 = vmatmul.f32.gmra.mxu0 %v511
    %v530 = vpop.f32.mrf.mxu0
    %v531 = vadd.f32 0.0, %v530
    %532 = vdwg.mxu0
    %533 = vmatpush.msra.mxu0 0.0
    %534 = vmatpush.msra.mxu0 0.0
    %535 = vmatpush.msra.mxu0 0.0
    %536 = vmatpush.msra.mxu0 0.0
    %537 = vmatpush.msra.mxu0 0.0
    %538 = vmatpush.msra.mxu0 0.0
    %539 = vmatpush.msra.mxu0 0.0
    %540 = vmatpush.msra.mxu0 0.0
    %541 = vmatpush.msra.mxu0 0.0
    %542 = vmatpush.msra.mxu0 0.0
    %543 = vmatpush.msra.mxu0 0.0
    %544 = vmatpush.msra.mxu0 0.0
    %545 = vmatpush.msra.mxu0 0.0
    %546 = vmatpush.msra.mxu0 0.0
    %547 = vmatpush.msra.mxu0 0.0
    %548 = vmatpush.msra.mxu0 %v507
    %549 = vmatmul.f32.gmra.mxu0 %v511
    %v550 = vpop.f32.mrf.mxu0
    %v551 = vadd.f32 0.0, %v550
    %552 = vdwg.mxu0
    %553 = vmatpush.msra.mxu0 %v240
    %554 = vmatpush.msra.mxu0 %v239
    %555 = vmatpush.msra.mxu0 %v238
    %556 = vmatpush.msra.mxu0 %v237
    %557 = vmatpush.msra.mxu0 %v236
    %558 = vmatpush.msra.mxu0 %v235
    %559 = vmatpush.msra.mxu0 %v234
    %560 = vmatpush.msra.mxu0 %v233
    %561 = vmatpush.msra.mxu0 %v232
    %562 = vmatpush.msra.mxu0 %v231
    %563 = vmatpush.msra.mxu0 %v230
    %564 = vmatpush.msra.mxu0 %v229
    %565 = vmatpush.msra.mxu0 %v228
    %566 = vmatpush.msra.mxu0 %v227
    %567 = vmatpush.msra.mxu0 %v226
    %568 = vmatpush.msra.mxu0 %v225
    %569 = vmatmul.f32.gmra.mxu0 %v531
    %v570 = vpop.f32.mrf.mxu0
    %v571 = vadd.f32 0.0, %v570
    %572 = vdwg.mxu0
    %573 = vmatpush.msra.mxu0 %v256
    %574 = vmatpush.msra.mxu0 %v255
    %575 = vmatpush.msra.mxu0 %v254
    %576 = vmatpush.msra.mxu0 %v253
    %577 = vmatpush.msra.mxu0 %v252
    %578 = vmatpush.msra.mxu0 %v251
    %579 = vmatpush.msra.mxu0 %v250
    %580 = vmatpush.msra.mxu0 %v249
    %581 = vmatpush.msra.mxu0 %v248
    %582 = vmatpush.msra.mxu0 %v247
    %583 = vmatpush.msra.mxu0 %v246
    %584 = vmatpush.msra.mxu0 %v245
    %585 = vmatpush.msra.mxu0 %v244
    %586 = vmatpush.msra.mxu0 %v243
    %587 = vmatpush.msra.mxu0 %v242
    %588 = vmatpush.msra.mxu0 %v241
    %589 = vmatmul.f32.gmra.mxu0 %v551
    %v590 = vpop.f32.mrf.mxu0
    %v591 = vadd.f32 %v571, %v590
    %592 = vdwg.mxu0
    %593 = vst [vmem:[#allocation11] sm:$0xf] %v591
    // Predicated region
    $region42: #{tpu_custom_call.1} parent=1 // pred_check
      _
    $region43: #{tpu_custom_call.1} parent=1 // pred_check_branch
      %595 = sbr.rel (0) target = $region45
    $region44: #{tpu_custom_call.1} parent=1 // pred_region
      %597 = vsyncadd [#allocation4], 0
      %s599 = sshll.u32 [#allocation11], 4
      %s600 = int_to_ptr.vmem [resolvable:$true] %s599
      %s601 = sshll.u32 %s5, 4
      %s602 = int_to_ptr.hbm [resolvable:$true] %s601
      %604 = dma.vmem_to_hbm [thread:$0]  %s600, 64, %s602, [#allocation4]
    $region45: #{tpu_custom_call.1} parent=1 // pred_fallthru
      _
    // Predicated region
    $region46: #{tpu_custom_call.1} parent=1 // pred_check
      _
    $region47: #{tpu_custom_call.1} parent=1 // pred_check_branch
      %606 = sbr.rel (0) target = $region49
    $region48: #{tpu_custom_call.1} parent=1 // pred_region
      %608 = dma.done [#allocation4], 64
    $region49: #{tpu_custom_call.1} parent=1 // pred_fallthru
      _
    %609 = vsyncpa [#allocation3], 1
    %610 = vsyncpa [#allocation6], 1
    %611 = vsyncpa [#allocation9], 1
    %612 = vsyncpa [#allocation4], 1

</llo_original>
